<compile_context>
chip_gen: v7x
topology: tpu7x:2x2x1
jax: 0.10.0
libtpu: 0.0.40
codegen_flags: <defaults>
</compile_context>

<pallas_src>
import functools

import jax
import jax.numpy as jnp
from jax.experimental import pallas as pl
from jax.experimental.pallas import tpu as pltpu

# --- module hyper-parameters (from __init__ defaults; no learnable weights) ---
V_TH = 20.0
L = 0.05
T_REF = 5.0

_LANES = 128
# 16384 rows x 128 lanes x f32 = 8 MiB per tile.  Grid steps cost ~0.35 us each,
# so big tiles keep per-step overhead <5% of the streaming time on every
# generation (most important on v7x's 3.2 TB/s HBM).
_MAX_BLOCK_ROWS = 16384


def _cc_activation_kernel(x_ref, o_ref, *, v_th, leak, t_ref):
    """Element-wise constant-current LIF activation on one (block_rows, 128) tile."""
    x = x_ref[...].astype(jnp.float32)
    thr = v_th * leak
    mask = x > thr
    # Guard the log argument for masked-out lanes (value discarded by the where).
    safe_x = jnp.where(mask, x, 2.0 * thr)
    u = thr / safe_x
    denom = t_ref - (1.0 / leak) * jnp.log(1.0 - u)
    # Exact divide: if u rounds to 1.0, denom = +inf and rate = 0 (no NaN).
    rate = 1.0 / denom
    out = jnp.where(mask, rate, 0.0)
    o_ref[...] = out.astype(o_ref.dtype)


def _cc_activation_jnp(x, v_th=V_TH, leak=L, t_ref=T_REF):
    """Pure-jnp fallback/reference mirroring the PyTorch constant_current_activate_func."""
    x32 = x.astype(jnp.float32)
    thr = v_th * leak
    mask = x32 > thr
    safe_x = jnp.where(mask, x32, 2.0 * thr)
    rate = 1.0 / (t_ref - (1.0 / leak) * jnp.log(1.0 - thr / safe_x))
    return jnp.where(mask, rate, 0.0)


def constant_current_activation(x, v_th=V_TH, leak=L, t_ref=T_REF):
    """Applies the constant-current activation element-wise. Preserves shape/dtype."""
    orig_shape = x.shape
    orig_dtype = x.dtype

    flat = x.reshape(-1)
    n = flat.shape[0]
    n_main = (n // _LANES) * _LANES  # 128-aligned prefix handled by the kernel
    tail_n = n - n_main

    kernel = functools.partial(
        _cc_activation_kernel, v_th=float(v_th), leak=float(leak), t_ref=float(t_ref)
    )

    out_main = None
    if n_main > 0:
        rows = n_main // _LANES
        x2d = flat[:n_main].reshape(rows, _LANES)

        # Biggest lane-dense tile that fits VMEM; if the whole slab is smaller
        # than the max tile, use a single full-array block.  When rows is not a
        # multiple of the block, the ragged grid tail is masked by Pallas.
        block_rows = rows if rows <= _MAX_BLOCK_ROWS else _MAX_BLOCK_ROWS
        grid = (pl.cdiv(rows, block_rows),)
        itemsize = jnp.dtype(orig_dtype).itemsize

        out2d = pl.pallas_call(
            kernel,
            out_shape=jax.ShapeDtypeStruct((rows, _LANES), orig_dtype),
            grid_spec=pltpu.PrefetchScalarGridSpec(
                num_scalar_prefetch=0,
                grid=grid,
                in_specs=[pl.BlockSpec((block_rows, _LANES), lambda i: (i, 0))],
                out_specs=pl.BlockSpec((block_rows, _LANES), lambda i: (i, 0)),
            ),
            compiler_params=pltpu.CompilerParams(
                # "parallel" lets the grid shard across both TensorCores on v7x;
                # no effect (and no cost) on single-TC v5e/v6e.
                dimension_semantics=("parallel",),
                # 8 MiB tiles, double-buffered in + out = ~32 MiB; leave headroom
                # below v7x's 64 MiB physical VMEM.
                vmem_limit_bytes=48 * 1024 * 1024,
            ),
            cost_estimate=pl.CostEstimate(
                flops=8 * n_main,
                transcendentals=n_main,
                bytes_accessed=2 * n_main * itemsize,
            ),
        )(x2d)
        out_main = out2d.reshape(-1)

    if tail_n > 0:
        # <128-element remainder: compute with plain jnp instead of padding the
        # whole tensor (avoids full-tensor pad + slice HBM passes).
        out_tail = _cc_activation_jnp(flat[n_main:], v_th, leak, t_ref).astype(orig_dtype)
        out_flat = out_tail if out_main is None else jnp.concatenate([out_main, out_tail])
    else:
        out_flat = out_main

    return out_flat.reshape(orig_shape)


if __name__ == "__main__":
    key0, key1 = jax.random.split(jax.random.PRNGKey(0))

    # Small NCHW input consistent with a conv-style feature map of mean currents.
    x = jax.random.uniform(key0, (2, 4, 16, 16), dtype=jnp.float32, minval=-5.0, maxval=25.0)
    out = jax.block_until_ready(constant_current_activation(x))
    ref = _cc_activation_jnp(x).astype(x.dtype)
    assert out.shape == x.shape and out.dtype == x.dtype
    assert jnp.allclose(out, ref, atol=1e-6, rtol=1e-6), "mismatch vs reference (aligned)"

    # Ragged case (numel not a multiple of 128): aligned-prefix kernel + jnp tail.
    y = jax.random.uniform(key1, (2, 3, 50), dtype=jnp.float32, minval=-5.0, maxval=25.0)
    out_y = jax.block_until_ready(constant_current_activation(y))
    ref_y = _cc_activation_jnp(y).astype(y.dtype)
    assert out_y.shape == y.shape and out_y.dtype == y.dtype
    assert jnp.allclose(out_y, ref_y, atol=1e-6, rtol=1e-6), "mismatch vs reference (ragged)"

    print("KERNEL_OK")
</pallas_src>

<mosaic_0001>
module attributes {stable_mosaic.version = 11 : i64} {
  func.func @_cc_activation_kernel(%arg0: i32, %arg1: memref<16x128xf32, #tpu.memory_space<vmem>>, %arg2: memref<16x128xf32, #tpu.memory_space<vmem>>) attributes {dimension_semantics = [#tpu.dimension_semantics<parallel>], iteration_bounds = array<i64: 1>, scalar_prefetch = 0 : i64, scratch_operands = 0 : i64, tpu.core_type = #tpu.core_type<tc>, window_params = [{transform_indices = @transform_0, window_bounds = array<i64: 16, 128>}, {transform_indices = @transform_1, window_bounds = array<i64: 16, 128>}]} {
    %c0 = arith.constant 0 : index
    %c0_0 = arith.constant 0 : index
    %0 = vector.load %arg1[%c0, %c0_0] : memref<16x128xf32, #tpu.memory_space<vmem>>, vector<16x128xf32>
    %cst = arith.constant 1.000000e+00 : f32
    %1 = vector.broadcast %cst : f32 to vector<16x128xf32>
    %2 = arith.cmpf ogt, %0, %1 : vector<16x128xf32>
    %cst_1 = arith.constant 2.000000e+00 : f32
    %3 = vector.broadcast %cst_1 : f32 to vector<16x128xf32>
    %4 = arith.select %2, %0, %3 : vector<16x128xi1>, vector<16x128xf32>
    %cst_2 = arith.constant 1.000000e+00 : f32
    %5 = vector.broadcast %cst_2 : f32 to vector<16x128xf32>
    %6 = arith.divf %5, %4 : vector<16x128xf32>
    %cst_3 = arith.constant 1.000000e+00 : f32
    %7 = vector.broadcast %cst_3 : f32 to vector<16x128xf32>
    %8 = arith.subf %7, %6 : vector<16x128xf32>
    %9 = math.log %8 : vector<16x128xf32>
    %cst_4 = arith.constant 2.000000e+01 : f32
    %10 = vector.broadcast %cst_4 : f32 to vector<16x128xf32>
    %11 = arith.mulf %10, %9 : vector<16x128xf32>
    %cst_5 = arith.constant 5.000000e+00 : f32
    %12 = vector.broadcast %cst_5 : f32 to vector<16x128xf32>
    %13 = arith.subf %12, %11 : vector<16x128xf32>
    %cst_6 = arith.constant 1.000000e+00 : f32
    %14 = vector.broadcast %cst_6 : f32 to vector<16x128xf32>
    %15 = arith.divf %14, %13 : vector<16x128xf32>
    %cst_7 = arith.constant 0.000000e+00 : f32
    %16 = vector.broadcast %cst_7 : f32 to vector<16x128xf32>
    %17 = arith.select %2, %15, %16 : vector<16x128xi1>, vector<16x128xf32>
    %c0_8 = arith.constant 0 : index
    %c0_9 = arith.constant 0 : index
    %18 = vector.load %arg2[%c0_8, %c0_9] : memref<16x128xf32, #tpu.memory_space<vmem>>, vector<16x128xf32>
    tpu.vector_store %arg2[%c0_8, %c0_9], %17 {strides = array<i32>} : memref<16x128xf32, #tpu.memory_space<vmem>>, vector<16x128xf32>,
    return
  }
  func.func @transform_0(%arg0: i32) -> (i32, i32) {
    %c0_i32 = arith.constant 0 : i32
    %c0_i32_0 = arith.constant 0 : i32
    return %arg0, %c0_i32 : i32, i32
  }
  func.func @transform_1(%arg0: i32) -> (i32, i32) {
    %c0_i32 = arith.constant 0 : i32
    %c0_i32_0 = arith.constant 0 : i32
    return %arg0, %c0_i32 : i32, i32
  }
}

</mosaic_0001>

<llo_original>
// kernel: tpu_custom_call.1
$region0: #{tpu_custom_call.1}
  #allocation0 [shape = 'u32[]', space=smem, size = 0x4, offset = 0x4, fixed_abs, tag = 'smem constant byte address 0x4 - core index']
  #allocation1 [shape = 'u32[144,128]{1,0:T(1,128)}', space=vmem, size = 0x12000, scoped, tag = 'internal scratch']
  %s0 = inlined_call_operand.hbm [shape: f32[16,128], index: 0, kind: input, shape index: {}]
  %s1 = inlined_call_operand.hbm [shape: f32[16,128], index: 1, kind: output, shape index: {}]
  %s2 = sld [smem:[#allocation0]]
  $region18: #{tpu_custom_call.1} parent=0
    _
  %s4 = ssub.s32 1, %s2
  %s5 = scalar_select 0, %s4, %s2
  $region1: #{tpu_custom_call.1} parent=0
    #allocation2 [shape = 'u8[8192]{0}', space=vmem, size = 0x2000, scoped, tag = 'input window, operand 0, single buffered']
    #allocation3 [shape = 's32[1]{0}', space=sflag, size = 0x4, scoped, tag = 'scoped memory for tpu_custom_call.1']
    #allocation4 [shape = 's32[1]{0}', space=sflag, size = 0x4, scoped, tag = 'scoped memory for tpu_custom_call.1']
    #allocation5 [shape = 'u8[8192]{0}', space=vmem, size = 0x2000, scoped, tag = 'output window, operand 0, single buffered']
    %6 = vsyncpa [#allocation3], 0
    %7 = vsyncpa [#allocation4], 0
    // Predicated region
    $region2: #{tpu_custom_call.1} parent=1 // pred_check
      _
    $region3: #{tpu_custom_call.1} parent=1 // pred_check_branch
      %9 = sbr.rel (0) target = $region5
    $region4: #{tpu_custom_call.1} parent=1 // pred_region
      %s11 = ssub.s32 256, 256
      %12 = vsyncadd [#allocation3], %s11
      %s13 = sshll.u32 [#allocation2], 4
      %s14 = int_to_ptr.vmem [resolvable:$true] %s13
      %19 = dma.hbm_to_vmem [thread:$0]  %s0, 256, %s14, [#allocation3], 128, 128, 8
    $region5: #{tpu_custom_call.1} parent=1 // pred_fallthru
      _
    // Predicated region
    $region6: #{tpu_custom_call.1} parent=1 // pred_check
      _
    $region7: #{tpu_custom_call.1} parent=1 // pred_check_branch
      %21 = sbr.rel (0) target = $region9
    $region8: #{tpu_custom_call.1} parent=1 // pred_region
      %22 = dma.done [#allocation3], 256
    $region9: #{tpu_custom_call.1} parent=1 // pred_fallthru
      _
    %v23 = vld [vmem:[#allocation2] sm:$0xff]
    %v24 = vld [vmem:[#allocation2 + $0x8] sm:$0xff]
    %vm25 = vcmp.gt.f32.partialorder %v23, 1.0
    %vm26 = vcmp.gt.f32.partialorder %v24, 1.0
    %v27 = vsel %vm25, %v23, 2.0
    %v28 = vsel %vm26, %v24, 2.0
    %v29 = vrcp.pop %v27
    %v30 = vmul.f32 1.0, %v29
    %v31 = vrcp.pop %v28
    %v32 = vmul.f32 1.0, %v31
    %v33 = vsub.f32 1.0, %v30
    %v34 = vsub.f32 1.0, %v32
    %v35 = vlog2.pop %v33
    %v36 = vmul.f32 %v35, 0.6931472
    %v37 = vlog2.pop %v34
    %v38 = vmul.f32 %v37, 0.6931472
    %v39 = vmul.f32 %v36, 20.0
    %v40 = vmul.f32 %v38, 20.0
    %v41 = vsub.f32 5.0, %v39
    %v42 = vsub.f32 5.0, %v40
    %v43 = vrcp.pop %v41
    %v44 = vmul.f32 1.0, %v43
    %v45 = vrcp.pop %v42
    %v46 = vmul.f32 1.0, %v45
    %v47 = vsel %vm25, %v44, 0.0
    %v48 = vsel %vm26, %v46, 0.0
    %49 = vst [vmem:[#allocation5] sm:$0xff] %v47
    %50 = vst [vmem:[#allocation5 + $0x8] sm:$0xff] %v48
    // Predicated region
    $region10: #{tpu_custom_call.1} parent=1 // pred_check
      _
    $region11: #{tpu_custom_call.1} parent=1 // pred_check_branch
      %52 = sbr.rel (0) target = $region13
    $region12: #{tpu_custom_call.1} parent=1 // pred_region
      %s54 = ssub.s32 256, 256
      %55 = vsyncadd [#allocation4], %s54
      %s56 = sshll.u32 [#allocation5], 4
      %s57 = int_to_ptr.vmem [resolvable:$true] %s56
      %62 = dma.vmem_to_hbm [thread:$0]  %s57, 256, %s1, [#allocation4], 128, 128, 8
    $region13: #{tpu_custom_call.1} parent=1 // pred_fallthru
      _
    // Predicated region
    $region14: #{tpu_custom_call.1} parent=1 // pred_check
      _
    $region15: #{tpu_custom_call.1} parent=1 // pred_check_branch
      %64 = sbr.rel (0) target = $region17
    $region16: #{tpu_custom_call.1} parent=1 // pred_region
      %65 = dma.done [#allocation4], 256
    $region17: #{tpu_custom_call.1} parent=1 // pred_fallthru
      _
    %66 = vsyncpa [#allocation3], 1
    %67 = vsyncpa [#allocation4], 1

</llo_original>
